<compile_context>
chip_gen: v6e
topology: v6e:2x2x1
jax: 0.10.0
libtpu: 0.0.40
codegen_flags: <defaults>
</compile_context>

<pallas_src>
import jax
import jax.numpy as jnp
from jax.experimental import pallas as pl
from jax.experimental.pallas import tpu as pltpu


def _svbmm_kernel(s_ref, v_ref, o_ref):
    # s_ref: (Gb, QT, KVT), v_ref: (Gb, KVT, H), o_ref: (Gb, QT, H)
    acc = jnp.einsum(
        "gqk,gkh->gqh",
        s_ref[...],
        v_ref[...],
        preferred_element_type=jnp.float32,
    )
    o_ref[...] = acc.astype(o_ref.dtype)


def _round_up(x, m):
    return -(-x // m) * m


def _padded_vmem_bytes(rows, cols, itemsize):
    # Conservative (8, 128) vreg-tile footprint estimate for the last 2 dims.
    return _round_up(max(rows, 1), 8) * _round_up(max(cols, 1), 128) * itemsize


def _pick_group_block(G, per_group_vmem_bytes, per_group_hbm_bytes,
                      *, target_block_vmem_bytes=4 << 20,
                      min_parallel_steps=4):
    """How many (B*M) groups per grid step, and whether padding is needed.

    Budget on the lane/sublane-padded VMEM footprint (double-buffered blocks
    must fit the default scoped-VMEM limit on v5e/v6e/v7x), keep a few grid
    steps alive for megacore sharding on problems large enough to care, and
    snap to a divisor of G when possible to avoid the padding copy.
    """
    gb = max(1, min(G, target_block_vmem_bytes // max(per_group_vmem_bytes, 1)))
    if G * per_group_hbm_bytes >= min_parallel_steps * (256 << 10):
        gb = min(gb, max(1, pl.cdiv(G, min_parallel_steps)))

    # Largest divisor of G that is <= gb.
    best_div = 1
    i = 1
    while i * i <= G:
        if G % i == 0:
            lo, hi = i, G // i
            if lo <= gb:
                best_div = max(best_div, lo)
            if hi <= gb:
                best_div = max(best_div, hi)
        i += 1

    if best_div * 4 >= gb:          # divisor keeps >= ~25% of the target block
        return int(best_div), False  # exact tiling, no padding
    return int(gb), True             # ragged: caller pads the group axis


def svbmm(s, v):
    """Pallas implementation of SVBmm.forward.

    s: [B, M, QT, KVT], v: [B, M, KVT, H] -> out: [B, M, QT, H]
    """
    B, M, QT, KVT = s.shape
    _, _, _, H = v.shape
    G = B * M

    out_dtype = jnp.result_type(s.dtype, v.dtype)

    s_f = s.reshape(G, QT, KVT)
    v_f = v.reshape(G, KVT, H)

    s_it = jnp.dtype(s.dtype).itemsize
    v_it = jnp.dtype(v.dtype).itemsize
    o_it = jnp.dtype(out_dtype).itemsize

    per_group_hbm_bytes = s_it * QT * KVT + v_it * KVT * H + o_it * QT * H
    per_group_vmem_bytes = (
        _padded_vmem_bytes(QT, KVT, s_it)
        + _padded_vmem_bytes(KVT, H, v_it)
        + _padded_vmem_bytes(QT, H, o_it)
    )

    gb, needs_pad = _pick_group_block(G, per_group_vmem_bytes,
                                      per_group_hbm_bytes)

    if needs_pad:
        G_pad = pl.cdiv(G, gb) * gb
        pad = G_pad - G
        s_f = jnp.pad(s_f, ((0, pad), (0, 0), (0, 0)))
        v_f = jnp.pad(v_f, ((0, pad), (0, 0), (0, 0)))
    else:
        G_pad = G

    grid = (G_pad // gb,)

    cost = pl.CostEstimate(
        flops=int(2 * G * QT * KVT * H),
        transcendentals=0,
        bytes_accessed=int(G * per_group_hbm_bytes),
    )

    out_f = pl.pallas_call(
        _svbmm_kernel,
        out_shape=jax.ShapeDtypeStruct((G_pad, QT, H), out_dtype),
        grid_spec=pltpu.PrefetchScalarGridSpec(
            num_scalar_prefetch=0,
            grid=grid,
            in_specs=[
                pl.BlockSpec((gb, QT, KVT), lambda g: (g, 0, 0)),
                pl.BlockSpec((gb, KVT, H), lambda g: (g, 0, 0)),
            ],
            out_specs=pl.BlockSpec((gb, QT, H), lambda g: (g, 0, 0)),
        ),
        compiler_params=pltpu.CompilerParams(
            dimension_semantics=("parallel",),
        ),
        cost_estimate=cost,
    )(s_f, v_f)

    if G_pad != G:
        out_f = out_f[:G]
    return out_f.reshape(B, M, QT, H)


if __name__ == "__main__":
    # Small shapes consistent with the module's forward:
    # B=2, M=4 (heads), QT=8 (query tokens), KVT=8 (kv tokens), H=32 (head dim)
    B, M, QT, KVT, H = 2, 4, 8, 8, 32

    key = jax.random.PRNGKey(0)
    ks, kv = jax.random.split(key)
    s = jax.random.normal(ks, (B, M, QT, KVT), dtype=jnp.float32)
    v = jax.random.normal(kv, (B, M, KVT, H), dtype=jnp.float32)

    out = svbmm(s, v)
    out = jax.block_until_ready(out)

    # Pure-JAX reference (mirrors the PyTorch broadcast + sum).
    ref = jnp.sum(
        s.reshape(B, M, QT, KVT, 1) * v.reshape(B, M, 1, KVT, H),
        axis=-2,
    ).reshape(B, M, QT, H)

    assert out.shape == (B, M, QT, H)
    assert jnp.allclose(out, ref, atol=1e-4, rtol=1e-4)
    print("KERNEL_OK")
</pallas_src>

<mosaic_0001>
module attributes {stable_mosaic.version = 11 : i64} {
  func.func @_svbmm_kernel(%arg0: i32, %arg1: memref<8x8x8xf32, #tpu.memory_space<vmem>>, %arg2: memref<8x8x32xf32, #tpu.memory_space<vmem>>, %arg3: memref<8x8x32xf32, #tpu.memory_space<vmem>>) attributes {dimension_semantics = [#tpu.dimension_semantics<parallel>], iteration_bounds = array<i64: 1>, scalar_prefetch = 0 : i64, scratch_operands = 0 : i64, tpu.core_type = #tpu.core_type<tc>, window_params = [{transform_indices = @transform_0, window_bounds = array<i64: 8, 8, 8>}, {transform_indices = @transform_1, window_bounds = array<i64: 8, 8, 32>}, {transform_indices = @transform_2, window_bounds = array<i64: 8, 8, 32>}]} {
    %c0 = arith.constant 0 : index
    %c0_0 = arith.constant 0 : index
    %c0_1 = arith.constant 0 : index
    %0 = vector.load %arg1[%c0, %c0_0, %c0_1] : memref<8x8x8xf32, #tpu.memory_space<vmem>>, vector<8x8x8xf32>
    %c0_2 = arith.constant 0 : index
    %c0_3 = arith.constant 0 : index
    %c0_4 = arith.constant 0 : index
    %1 = vector.load %arg2[%c0_2, %c0_3, %c0_4] : memref<8x8x32xf32, #tpu.memory_space<vmem>>, vector<8x8x32xf32>
    "tpu.trace_start"() <{level = 10 : i32, message = "gqk,gkh->gqh"}> : () -> ()
    %cst = arith.constant dense<0.000000e+00> : vector<8x8x32xf32>
    %2 = tpu.matmul %0, %1, %cst {dimension_numbers = #tpu.dot_dimension_numbers<[2], [1], [1], [2], [0, 0, 0, 1, 1, 2], [0], [0]>} : vector<8x8x8xf32>, vector<8x8x32xf32>, vector<8x8x32xf32> -> vector<8x8x32xf32>
    "tpu.trace_stop"() : () -> ()
    %c0_5 = arith.constant 0 : index
    %c0_6 = arith.constant 0 : index
    %c0_7 = arith.constant 0 : index
    %3 = vector.load %arg3[%c0_5, %c0_6, %c0_7] : memref<8x8x32xf32, #tpu.memory_space<vmem>>, vector<8x8x32xf32>
    tpu.vector_store %arg3[%c0_5, %c0_6, %c0_7], %2 {strides = array<i32>} : memref<8x8x32xf32, #tpu.memory_space<vmem>>, vector<8x8x32xf32>,
    return
  }
  func.func @transform_0(%arg0: i32) -> (i32, i32, i32) {
    %c0_i32 = arith.constant 0 : i32
    %c0_i32_0 = arith.constant 0 : i32
    %c0_i32_1 = arith.constant 0 : i32
    return %arg0, %c0_i32, %c0_i32_0 : i32, i32, i32
  }
  func.func @transform_1(%arg0: i32) -> (i32, i32, i32) {
    %c0_i32 = arith.constant 0 : i32
    %c0_i32_0 = arith.constant 0 : i32
    %c0_i32_1 = arith.constant 0 : i32
    return %arg0, %c0_i32, %c0_i32_0 : i32, i32, i32
  }
  func.func @transform_2(%arg0: i32) -> (i32, i32, i32) {
    %c0_i32 = arith.constant 0 : i32
    %c0_i32_0 = arith.constant 0 : i32
    %c0_i32_1 = arith.constant 0 : i32
    return %arg0, %c0_i32, %c0_i32_0 : i32, i32, i32
  }
}

</mosaic_0001>

<llo_original>
// kernel: tpu_custom_call.1
$region0: #{tpu_custom_call.1}
  #allocation0 [shape = 'u32[]', space=smem, size = 0x4, offset = 0x4, fixed_abs, tag = 'smem constant byte address 0x4 - core index']
  #allocation1 [shape = 'u32[144,128]{1,0:T(1,128)}', space=vmem, size = 0x12000, scoped, tag = 'internal scratch']
  %s0 = inlined_call_operand.hbm [shape: f32[8,8,8], index: 0, kind: input, shape index: {}]
  %s1 = inlined_call_operand.hbm [shape: f32[8,8,32], index: 1, kind: input, shape index: {}]
  %s2 = inlined_call_operand.hbm [shape: f32[8,8,32], index: 2, kind: output, shape index: {}]
  %s3 = sld [smem:[#allocation0]]
  $region26: #{tpu_custom_call.1} parent=0
    _
  %s5 = ssub.s32 1, %s3
  %s6 = scalar_select 0, %s5, %s3
  $region1: #{tpu_custom_call.1} parent=0
    #allocation2 [shape = 'u8[32768]{0}', space=vmem, size = 0x8000, scoped, tag = 'input window, operand 0, single buffered']
    #allocation3 [shape = 's32[1]{0}', space=sflag, size = 0x4, scoped, tag = 'scoped memory for tpu_custom_call.1']
    #allocation4 [shape = 's32[1]{0}', space=sflag, size = 0x4, scoped, tag = 'scoped memory for tpu_custom_call.1']
    #allocation5 [shape = 'u8[32768]{0}', space=vmem, size = 0x8000, scoped, tag = 'input window, operand 1, single buffered']
    #allocation6 [shape = 's32[1]{0}', space=sflag, size = 0x4, scoped, tag = 'scoped memory for tpu_custom_call.1']
    #allocation7 [shape = 'u8[32768]{0}', space=vmem, size = 0x8000, scoped, tag = 'output window, operand 0, single buffered']
    %7 = vsyncpa [#allocation3], 0
    %8 = vsyncpa [#allocation6], 0
    %9 = vsyncpa [#allocation4], 0
    // Predicated region
    $region2: #{tpu_custom_call.1} parent=1 // pred_check
      _
    $region3: #{tpu_custom_call.1} parent=1 // pred_check_branch
      %11 = sbr.rel (0) target = $region5
    $region4: #{tpu_custom_call.1} parent=1 // pred_region
      %s13 = ssub.s32 1024, 1024
      %14 = vsyncadd [#allocation3], %s13
      %s15 = sshll.u32 [#allocation2], 4
      %s16 = int_to_ptr.vmem [resolvable:$true] %s15
      %21 = dma.hbm_to_vmem [thread:$0]  %s0, 1024, %s16, [#allocation3], 128, 128, 8
    $region5: #{tpu_custom_call.1} parent=1 // pred_fallthru
      _
    // Predicated region
    $region6: #{tpu_custom_call.1} parent=1 // pred_check
      _
    $region7: #{tpu_custom_call.1} parent=1 // pred_check_branch
      %23 = sbr.rel (0) target = $region9
    $region8: #{tpu_custom_call.1} parent=1 // pred_region
      %s25 = ssub.s32 1024, 1024
      %26 = vsyncadd [#allocation6], %s25
      %s27 = sshll.u32 [#allocation5], 4
      %s28 = int_to_ptr.vmem [resolvable:$true] %s27
      %33 = dma.hbm_to_vmem [thread:$0]  %s1, 1024, %s28, [#allocation6], 128, 128, 8
    $region9: #{tpu_custom_call.1} parent=1 // pred_fallthru
      _
    // Predicated region
    $region10: #{tpu_custom_call.1} parent=1 // pred_check
      _
    $region11: #{tpu_custom_call.1} parent=1 // pred_check_branch
      %35 = sbr.rel (0) target = $region13
    $region12: #{tpu_custom_call.1} parent=1 // pred_region
      %36 = dma.done [#allocation3], 1024
    $region13: #{tpu_custom_call.1} parent=1 // pred_fallthru
      _
    // Predicated region
    $region14: #{tpu_custom_call.1} parent=1 // pred_check
      _
    $region15: #{tpu_custom_call.1} parent=1 // pred_check_branch
      %38 = sbr.rel (0) target = $region17
    $region16: #{tpu_custom_call.1} parent=1 // pred_region
      %39 = dma.done [#allocation6], 1024
    $region17: #{tpu_custom_call.1} parent=1 // pred_fallthru
      _
    %v40 = vld [vmem:[#allocation2] sm:$0xff]
    %v41 = vld [vmem:[#allocation2 + $0x8] sm:$0xff]
    %v42 = vld [vmem:[#allocation2 + $0x10] sm:$0xff]
    %v43 = vld [vmem:[#allocation2 + $0x18] sm:$0xff]
    %v44 = vld [vmem:[#allocation2 + $0x20] sm:$0xff]
    %v45 = vld [vmem:[#allocation2 + $0x28] sm:$0xff]
    %v46 = vld [vmem:[#allocation2 + $0x30] sm:$0xff]
    %v47 = vld [vmem:[#allocation2 + $0x38] sm:$0xff]
    %v48 = vld [vmem:[#allocation5] sm:$0xff]
    %v49 = vld [vmem:[#allocation5 + $0x8] sm:$0xff]
    %v50 = vld [vmem:[#allocation5 + $0x10] sm:$0xff]
    %v51 = vld [vmem:[#allocation5 + $0x18] sm:$0xff]
    %v52 = vld [vmem:[#allocation5 + $0x20] sm:$0xff]
    %v53 = vld [vmem:[#allocation5 + $0x28] sm:$0xff]
    %v54 = vld [vmem:[#allocation5 + $0x30] sm:$0xff]
    %v55 = vld [vmem:[#allocation5 + $0x38] sm:$0xff]
    %vm56 = vcmask 64512
    %v58 = vsel %vm56, %v40, 0
    %60 = vmatprep.subr.mxu0 0.0
    %61 = vmatpush1.msra.mxu0 0.0
    %62 = vmatprep.subr.mxu0 0.0
    %63 = vmatpush1.msra.mxu0 0.0
    %64 = vmatprep.subr.mxu0 0.0
    %65 = vmatpush1.msra.mxu0 0.0
    %66 = vmatprep.subr.mxu0 0.0
    %67 = vmatpush1.msra.mxu0 0.0
    %68 = vmatprep.subr.mxu0 0.0
    %69 = vmatpush1.msra.mxu0 0.0
    %70 = vmatprep.subr.mxu0 0.0
    %71 = vmatpush1.msra.mxu0 0.0
    %72 = vmatprep.subr.mxu0 0.0
    %73 = vmatpush1.msra.mxu0 0.0
    %74 = vmatprep.subr.mxu0 0.0
    %75 = vmatpush1.msra.mxu0 0.0
    %76 = vmatprep.subr.mxu0 0.0
    %77 = vmatpush1.msra.mxu0 0.0
    %78 = vmatprep.subr.mxu0 0.0
    %79 = vmatpush1.msra.mxu0 0.0
    %80 = vmatprep.subr.mxu0 0.0
    %81 = vmatpush1.msra.mxu0 0.0
    %82 = vmatprep.subr.mxu0 0.0
    %83 = vmatpush1.msra.mxu0 0.0
    %84 = vmatprep.subr.mxu0 0.0
    %85 = vmatpush1.msra.mxu0 0.0
    %86 = vmatprep.subr.mxu0 0.0
    %87 = vmatpush1.msra.mxu0 0.0
    %88 = vmatprep.subr.mxu0 0.0
    %89 = vmatpush1.msra.mxu0 0.0
    %90 = vmatprep.subr.mxu0 0.0
    %91 = vmatpush1.msra.mxu0 %v48
    %92 = vmatprep.subr.mxu0 0.0
    %93 = vmatpush2.msra.mxu0 0.0
    %94 = vmatprep.subr.mxu0 0.0
    %95 = vmatpush2.msra.mxu0 0.0
    %96 = vmatprep.subr.mxu0 0.0
    %97 = vmatpush2.msra.mxu0 0.0
    %98 = vmatprep.subr.mxu0 0.0
    %99 = vmatpush2.msra.mxu0 0.0
    %100 = vmatprep.subr.mxu0 0.0
    %101 = vmatpush2.msra.mxu0 0.0
    %102 = vmatprep.subr.mxu0 0.0
    %103 = vmatpush2.msra.mxu0 0.0
    %104 = vmatprep.subr.mxu0 0.0
    %105 = vmatpush2.msra.mxu0 0.0
    %106 = vmatprep.subr.mxu0 0.0
    %107 = vmatpush2.msra.mxu0 0.0
    %108 = vmatprep.subr.mxu0 0.0
    %109 = vmatpush2.msra.mxu0 0.0
    %110 = vmatprep.subr.mxu0 0.0
    %111 = vmatpush2.msra.mxu0 0.0
    %112 = vmatprep.subr.mxu0 0.0
    %113 = vmatpush2.msra.mxu0 0.0
    %114 = vmatprep.subr.mxu0 0.0
    %115 = vmatpush2.msra.mxu0 0.0
    %116 = vmatprep.subr.mxu0 0.0
    %117 = vmatpush2.msra.mxu0 0.0
    %118 = vmatprep.subr.mxu0 0.0
    %119 = vmatpush2.msra.mxu0 0.0
    %120 = vmatprep.subr.mxu0 0.0
    %121 = vmatpush2.msra.mxu0 0.0
    %122 = vmatprep.subr.mxu0 0.0
    %123 = vmatpush2.msra.mxu0 0.0
    %124 = vmatprep.mubr.f32.mxu0 0.0
    %125 = vmatmul.mubr.f32.gmra.mxu0 %v58
    %v126 = vpop.f32.mrf.mxu0
    %v127 = vadd.f32 0.0, %v126
    %v128 = vpop.f32.mrf.mxu0
    %129 = vdwg.mxu0
    %v131 = vsel %vm56, %v41, 0
    %133 = vmatprep.subr.mxu0 0.0
    %134 = vmatpush1.msra.mxu0 0.0
    %135 = vmatprep.subr.mxu0 0.0
    %136 = vmatpush1.msra.mxu0 0.0
    %137 = vmatprep.subr.mxu0 0.0
    %138 = vmatpush1.msra.mxu0 0.0
    %139 = vmatprep.subr.mxu0 0.0
    %140 = vmatpush1.msra.mxu0 0.0
    %141 = vmatprep.subr.mxu0 0.0
    %142 = vmatpush1.msra.mxu0 0.0
    %143 = vmatprep.subr.mxu0 0.0
    %144 = vmatpush1.msra.mxu0 0.0
    %145 = vmatprep.subr.mxu0 0.0
    %146 = vmatpush1.msra.mxu0 0.0
    %147 = vmatprep.subr.mxu0 0.0
    %148 = vmatpush1.msra.mxu0 0.0
    %149 = vmatprep.subr.mxu0 0.0
    %150 = vmatpush1.msra.mxu0 0.0
    %151 = vmatprep.subr.mxu0 0.0
    %152 = vmatpush1.msra.mxu0 0.0
    %153 = vmatprep.subr.mxu0 0.0
    %154 = vmatpush1.msra.mxu0 0.0
    %155 = vmatprep.subr.mxu0 0.0
    %156 = vmatpush1.msra.mxu0 0.0
    %157 = vmatprep.subr.mxu0 0.0
    %158 = vmatpush1.msra.mxu0 0.0
    %159 = vmatprep.subr.mxu0 0.0
    %160 = vmatpush1.msra.mxu0 0.0
    %161 = vmatprep.subr.mxu0 0.0
    %162 = vmatpush1.msra.mxu0 0.0
    %163 = vmatprep.subr.mxu0 0.0
    %164 = vmatpush1.msra.mxu0 %v49
    %165 = vmatprep.subr.mxu0 0.0
    %166 = vmatpush2.msra.mxu0 0.0
    %167 = vmatprep.subr.mxu0 0.0
    %168 = vmatpush2.msra.mxu0 0.0
    %169 = vmatprep.subr.mxu0 0.0
    %170 = vmatpush2.msra.mxu0 0.0
    %171 = vmatprep.subr.mxu0 0.0
    %172 = vmatpush2.msra.mxu0 0.0
    %173 = vmatprep.subr.mxu0 0.0
    %174 = vmatpush2.msra.mxu0 0.0
    %175 = vmatprep.subr.mxu0 0.0
    %176 = vmatpush2.msra.mxu0 0.0
    %177 = vmatprep.subr.mxu0 0.0
    %178 = vmatpush2.msra.mxu0 0.0
    %179 = vmatprep.subr.mxu0 0.0
    %180 = vmatpush2.msra.mxu0 0.0
    %181 = vmatprep.subr.mxu0 0.0
    %182 = vmatpush2.msra.mxu0 0.0
    %183 = vmatprep.subr.mxu0 0.0
    %184 = vmatpush2.msra.mxu0 0.0
    %185 = vmatprep.subr.mxu0 0.0
    %186 = vmatpush2.msra.mxu0 0.0
    %187 = vmatprep.subr.mxu0 0.0
    %188 = vmatpush2.msra.mxu0 0.0
    %189 = vmatprep.subr.mxu0 0.0
    %190 = vmatpush2.msra.mxu0 0.0
    %191 = vmatprep.subr.mxu0 0.0
    %192 = vmatpush2.msra.mxu0 0.0
    %193 = vmatprep.subr.mxu0 0.0
    %194 = vmatpush2.msra.mxu0 0.0
    %195 = vmatprep.subr.mxu0 0.0
    %196 = vmatpush2.msra.mxu0 0.0
    %197 = vmatprep.mubr.f32.mxu0 0.0
    %198 = vmatmul.mubr.f32.gmra.mxu0 %v131
    %v199 = vpop.f32.mrf.mxu0
    %v200 = vadd.f32 0.0, %v199
    %v201 = vpop.f32.mrf.mxu0
    %202 = vdwg.mxu0
    %v204 = vsel %vm56, %v42, 0
    %206 = vmatprep.subr.mxu0 0.0
    %207 = vmatpush1.msra.mxu0 0.0
    %208 = vmatprep.subr.mxu0 0.0
    %209 = vmatpush1.msra.mxu0 0.0
    %210 = vmatprep.subr.mxu0 0.0
    %211 = vmatpush1.msra.mxu0 0.0
    %212 = vmatprep.subr.mxu0 0.0
    %213 = vmatpush1.msra.mxu0 0.0
    %214 = vmatprep.subr.mxu0 0.0
    %215 = vmatpush1.msra.mxu0 0.0
    %216 = vmatprep.subr.mxu0 0.0
    %217 = vmatpush1.msra.mxu0 0.0
    %218 = vmatprep.subr.mxu0 0.0
    %219 = vmatpush1.msra.mxu0 0.0
    %220 = vmatprep.subr.mxu0 0.0
    %221 = vmatpush1.msra.mxu0 0.0
    %222 = vmatprep.subr.mxu0 0.0
    %223 = vmatpush1.msra.mxu0 0.0
    %224 = vmatprep.subr.mxu0 0.0
    %225 = vmatpush1.msra.mxu0 0.0
    %226 = vmatprep.subr.mxu0 0.0
    %227 = vmatpush1.msra.mxu0 0.0
    %228 = vmatprep.subr.mxu0 0.0
    %229 = vmatpush1.msra.mxu0 0.0
    %230 = vmatprep.subr.mxu0 0.0
    %231 = vmatpush1.msra.mxu0 0.0
    %232 = vmatprep.subr.mxu0 0.0
    %233 = vmatpush1.msra.mxu0 0.0
    %234 = vmatprep.subr.mxu0 0.0
    %235 = vmatpush1.msra.mxu0 0.0
    %236 = vmatprep.subr.mxu0 0.0
    %237 = vmatpush1.msra.mxu0 %v50
    %238 = vmatprep.subr.mxu0 0.0
    %239 = vmatpush2.msra.mxu0 0.0
    %240 = vmatprep.subr.mxu0 0.0
    %241 = vmatpush2.msra.mxu0 0.0
    %242 = vmatprep.subr.mxu0 0.0
    %243 = vmatpush2.msra.mxu0 0.0
    %244 = vmatprep.subr.mxu0 0.0
    %245 = vmatpush2.msra.mxu0 0.0
    %246 = vmatprep.subr.mxu0 0.0
    %247 = vmatpush2.msra.mxu0 0.0
    %248 = vmatprep.subr.mxu0 0.0
    %249 = vmatpush2.msra.mxu0 0.0
    %250 = vmatprep.subr.mxu0 0.0
    %251 = vmatpush2.msra.mxu0 0.0
    %252 = vmatprep.subr.mxu0 0.0
    %253 = vmatpush2.msra.mxu0 0.0
    %254 = vmatprep.subr.mxu0 0.0
    %255 = vmatpush2.msra.mxu0 0.0
    %256 = vmatprep.subr.mxu0 0.0
    %257 = vmatpush2.msra.mxu0 0.0
    %258 = vmatprep.subr.mxu0 0.0
    %259 = vmatpush2.msra.mxu0 0.0
    %260 = vmatprep.subr.mxu0 0.0
    %261 = vmatpush2.msra.mxu0 0.0
    %262 = vmatprep.subr.mxu0 0.0
    %263 = vmatpush2.msra.mxu0 0.0
    %264 = vmatprep.subr.mxu0 0.0
    %265 = vmatpush2.msra.mxu0 0.0
    %266 = vmatprep.subr.mxu0 0.0
    %267 = vmatpush2.msra.mxu0 0.0
    %268 = vmatprep.subr.mxu0 0.0
    %269 = vmatpush2.msra.mxu0 0.0
    %270 = vmatprep.mubr.f32.mxu0 0.0
    %271 = vmatmul.mubr.f32.gmra.mxu0 %v204
    %v272 = vpop.f32.mrf.mxu0
    %v273 = vadd.f32 0.0, %v272
    %v274 = vpop.f32.mrf.mxu0
    %275 = vdwg.mxu0
    %v277 = vsel %vm56, %v43, 0
    %279 = vmatprep.subr.mxu0 0.0
    %280 = vmatpush1.msra.mxu0 0.0
    %281 = vmatprep.subr.mxu0 0.0
    %282 = vmatpush1.msra.mxu0 0.0
    %283 = vmatprep.subr.mxu0 0.0
    %284 = vmatpush1.msra.mxu0 0.0
    %285 = vmatprep.subr.mxu0 0.0
    %286 = vmatpush1.msra.mxu0 0.0
    %287 = vmatprep.subr.mxu0 0.0
    %288 = vmatpush1.msra.mxu0 0.0
    %289 = vmatprep.subr.mxu0 0.0
    %290 = vmatpush1.msra.mxu0 0.0
    %291 = vmatprep.subr.mxu0 0.0
    %292 = vmatpush1.msra.mxu0 0.0
    %293 = vmatprep.subr.mxu0 0.0
    %294 = vmatpush1.msra.mxu0 0.0
    %295 = vmatprep.subr.mxu0 0.0
    %296 = vmatpush1.msra.mxu0 0.0
    %297 = vmatprep.subr.mxu0 0.0
    %298 = vmatpush1.msra.mxu0 0.0
    %299 = vmatprep.subr.mxu0 0.0
    %300 = vmatpush1.msra.mxu0 0.0
    %301 = vmatprep.subr.mxu0 0.0
    %302 = vmatpush1.msra.mxu0 0.0
    %303 = vmatprep.subr.mxu0 0.0
    %304 = vmatpush1.msra.mxu0 0.0
    %305 = vmatprep.subr.mxu0 0.0
    %306 = vmatpush1.msra.mxu0 0.0
    %307 = vmatprep.subr.mxu0 0.0
    %308 = vmatpush1.msra.mxu0 0.0
    %309 = vmatprep.subr.mxu0 0.0
    %310 = vmatpush1.msra.mxu0 %v51
    %311 = vmatprep.subr.mxu0 0.0
    %312 = vmatpush2.msra.mxu0 0.0
    %313 = vmatprep.subr.mxu0 0.0
    %314 = vmatpush2.msra.mxu0 0.0
    %315 = vmatprep.subr.mxu0 0.0
    %316 = vmatpush2.msra.mxu0 0.0
    %317 = vmatprep.subr.mxu0 0.0
    %318 = vmatpush2.msra.mxu0 0.0
    %319 = vmatprep.subr.mxu0 0.0
    %320 = vmatpush2.msra.mxu0 0.0
    %321 = vmatprep.subr.mxu0 0.0
    %322 = vmatpush2.msra.mxu0 0.0
    %323 = vmatprep.subr.mxu0 0.0
    %324 = vmatpush2.msra.mxu0 0.0
    %325 = vmatprep.subr.mxu0 0.0
    %326 = vmatpush2.msra.mxu0 0.0
    %327 = vmatprep.subr.mxu0 0.0
    %328 = vmatpush2.msra.mxu0 0.0
    %329 = vmatprep.subr.mxu0 0.0
    %330 = vmatpush2.msra.mxu0 0.0
    %331 = vmatprep.subr.mxu0 0.0
    %332 = vmatpush2.msra.mxu0 0.0
    %333 = vmatprep.subr.mxu0 0.0
    %334 = vmatpush2.msra.mxu0 0.0
    %335 = vmatprep.subr.mxu0 0.0
    %336 = vmatpush2.msra.mxu0 0.0
    %337 = vmatprep.subr.mxu0 0.0
    %338 = vmatpush2.msra.mxu0 0.0
    %339 = vmatprep.subr.mxu0 0.0
    %340 = vmatpush2.msra.mxu0 0.0
    %341 = vmatprep.subr.mxu0 0.0
    %342 = vmatpush2.msra.mxu0 0.0
    %343 = vmatprep.mubr.f32.mxu0 0.0
    %344 = vmatmul.mubr.f32.gmra.mxu0 %v277
    %v345 = vpop.f32.mrf.mxu0
    %v346 = vadd.f32 0.0, %v345
    %v347 = vpop.f32.mrf.mxu0
    %348 = vdwg.mxu0
    %v350 = vsel %vm56, %v44, 0
    %352 = vmatprep.subr.mxu0 0.0
    %353 = vmatpush1.msra.mxu0 0.0
    %354 = vmatprep.subr.mxu0 0.0
    %355 = vmatpush1.msra.mxu0 0.0
    %356 = vmatprep.subr.mxu0 0.0
    %357 = vmatpush1.msra.mxu0 0.0
    %358 = vmatprep.subr.mxu0 0.0
    %359 = vmatpush1.msra.mxu0 0.0
    %360 = vmatprep.subr.mxu0 0.0
    %361 = vmatpush1.msra.mxu0 0.0
    %362 = vmatprep.subr.mxu0 0.0
    %363 = vmatpush1.msra.mxu0 0.0
    %364 = vmatprep.subr.mxu0 0.0
    %365 = vmatpush1.msra.mxu0 0.0
    %366 = vmatprep.subr.mxu0 0.0
    %367 = vmatpush1.msra.mxu0 0.0
    %368 = vmatprep.subr.mxu0 0.0
    %369 = vmatpush1.msra.mxu0 0.0
    %370 = vmatprep.subr.mxu0 0.0
    %371 = vmatpush1.msra.mxu0 0.0
    %372 = vmatprep.subr.mxu0 0.0
    %373 = vmatpush1.msra.mxu0 0.0
    %374 = vmatprep.subr.mxu0 0.0
    %375 = vmatpush1.msra.mxu0 0.0
    %376 = vmatprep.subr.mxu0 0.0
    %377 = vmatpush1.msra.mxu0 0.0
    %378 = vmatprep.subr.mxu0 0.0
    %379 = vmatpush1.msra.mxu0 0.0
    %380 = vmatprep.subr.mxu0 0.0
    %381 = vmatpush1.msra.mxu0 0.0
    %382 = vmatprep.subr.mxu0 0.0
    %383 = vmatpush1.msra.mxu0 %v52
    %384 = vmatprep.subr.mxu0 0.0
    %385 = vmatpush2.msra.mxu0 0.0
    %386 = vmatprep.subr.mxu0 0.0
    %387 = vmatpush2.msra.mxu0 0.0
    %388 = vmatprep.subr.mxu0 0.0
    %389 = vmatpush2.msra.mxu0 0.0
    %390 = vmatprep.subr.mxu0 0.0
    %391 = vmatpush2.msra.mxu0 0.0
    %392 = vmatprep.subr.mxu0 0.0
    %393 = vmatpush2.msra.mxu0 0.0
    %394 = vmatprep.subr.mxu0 0.0
    %395 = vmatpush2.msra.mxu0 0.0
    %396 = vmatprep.subr.mxu0 0.0
    %397 = vmatpush2.msra.mxu0 0.0
    %398 = vmatprep.subr.mxu0 0.0
    %399 = vmatpush2.msra.mxu0 0.0
    %400 = vmatprep.subr.mxu0 0.0
    %401 = vmatpush2.msra.mxu0 0.0
    %402 = vmatprep.subr.mxu0 0.0
    %403 = vmatpush2.msra.mxu0 0.0
    %404 = vmatprep.subr.mxu0 0.0
    %405 = vmatpush2.msra.mxu0 0.0
    %406 = vmatprep.subr.mxu0 0.0
    %407 = vmatpush2.msra.mxu0 0.0
    %408 = vmatprep.subr.mxu0 0.0
    %409 = vmatpush2.msra.mxu0 0.0
    %410 = vmatprep.subr.mxu0 0.0
    %411 = vmatpush2.msra.mxu0 0.0
    %412 = vmatprep.subr.mxu0 0.0
    %413 = vmatpush2.msra.mxu0 0.0
    %414 = vmatprep.subr.mxu0 0.0
    %415 = vmatpush2.msra.mxu0 0.0
    %416 = vmatprep.mubr.f32.mxu0 0.0
    %417 = vmatmul.mubr.f32.gmra.mxu0 %v350
    %v418 = vpop.f32.mrf.mxu0
    %v419 = vadd.f32 0.0, %v418
    %v420 = vpop.f32.mrf.mxu0
    %421 = vdwg.mxu0
    %v423 = vsel %vm56, %v45, 0
    %425 = vmatprep.subr.mxu0 0.0
    %426 = vmatpush1.msra.mxu0 0.0
    %427 = vmatprep.subr.mxu0 0.0
    %428 = vmatpush1.msra.mxu0 0.0
    %429 = vmatprep.subr.mxu0 0.0
    %430 = vmatpush1.msra.mxu0 0.0
    %431 = vmatprep.subr.mxu0 0.0
    %432 = vmatpush1.msra.mxu0 0.0
    %433 = vmatprep.subr.mxu0 0.0
    %434 = vmatpush1.msra.mxu0 0.0
    %435 = vmatprep.subr.mxu0 0.0
    %436 = vmatpush1.msra.mxu0 0.0
    %437 = vmatprep.subr.mxu0 0.0
    %438 = vmatpush1.msra.mxu0 0.0
    %439 = vmatprep.subr.mxu0 0.0
    %440 = vmatpush1.msra.mxu0 0.0
    %441 = vmatprep.subr.mxu0 0.0
    %442 = vmatpush1.msra.mxu0 0.0
    %443 = vmatprep.subr.mxu0 0.0
    %444 = vmatpush1.msra.mxu0 0.0
    %445 = vmatprep.subr.mxu0 0.0
    %446 = vmatpush1.msra.mxu0 0.0
    %447 = vmatprep.subr.mxu0 0.0
    %448 = vmatpush1.msra.mxu0 0.0
    %449 = vmatprep.subr.mxu0 0.0
    %450 = vmatpush1.msra.mxu0 0.0
    %451 = vmatprep.subr.mxu0 0.0
    %452 = vmatpush1.msra.mxu0 0.0
    %453 = vmatprep.subr.mxu0 0.0
    %454 = vmatpush1.msra.mxu0 0.0
    %455 = vmatprep.subr.mxu0 0.0
    %456 = vmatpush1.msra.mxu0 %v53
    %457 = vmatprep.subr.mxu0 0.0
    %458 = vmatpush2.msra.mxu0 0.0
    %459 = vmatprep.subr.mxu0 0.0
    %460 = vmatpush2.msra.mxu0 0.0
    %461 = vmatprep.subr.mxu0 0.0
    %462 = vmatpush2.msra.mxu0 0.0
    %463 = vmatprep.subr.mxu0 0.0
    %464 = vmatpush2.msra.mxu0 0.0
    %465 = vmatprep.subr.mxu0 0.0
    %466 = vmatpush2.msra.mxu0 0.0
    %467 = vmatprep.subr.mxu0 0.0
    %468 = vmatpush2.msra.mxu0 0.0
    %469 = vmatprep.subr.mxu0 0.0
    %470 = vmatpush2.msra.mxu0 0.0
    %471 = vmatprep.subr.mxu0 0.0
    %472 = vmatpush2.msra.mxu0 0.0
    %473 = vmatprep.subr.mxu0 0.0
    %474 = vmatpush2.msra.mxu0 0.0
    %475 = vmatprep.subr.mxu0 0.0
    %476 = vmatpush2.msra.mxu0 0.0
    %477 = vmatprep.subr.mxu0 0.0
    %478 = vmatpush2.msra.mxu0 0.0
    %479 = vmatprep.subr.mxu0 0.0
    %480 = vmatpush2.msra.mxu0 0.0
    %481 = vmatprep.subr.mxu0 0.0
    %482 = vmatpush2.msra.mxu0 0.0
    %483 = vmatprep.subr.mxu0 0.0
    %484 = vmatpush2.msra.mxu0 0.0
    %485 = vmatprep.subr.mxu0 0.0
    %486 = vmatpush2.msra.mxu0 0.0
    %487 = vmatprep.subr.mxu0 0.0
    %488 = vmatpush2.msra.mxu0 0.0
    %489 = vmatprep.mubr.f32.mxu0 0.0
    %490 = vmatmul.mubr.f32.gmra.mxu0 %v423
    %v491 = vpop.f32.mrf.mxu0
    %v492 = vadd.f32 0.0, %v491
    %v493 = vpop.f32.mrf.mxu0
    %494 = vdwg.mxu0
    %v496 = vsel %vm56, %v46, 0
    %498 = vmatprep.subr.mxu0 0.0
    %499 = vmatpush1.msra.mxu0 0.0
    %500 = vmatprep.subr.mxu0 0.0
    %501 = vmatpush1.msra.mxu0 0.0
    %502 = vmatprep.subr.mxu0 0.0
    %503 = vmatpush1.msra.mxu0 0.0
    %504 = vmatprep.subr.mxu0 0.0
    %505 = vmatpush1.msra.mxu0 0.0
    %506 = vmatprep.subr.mxu0 0.0
    %507 = vmatpush1.msra.mxu0 0.0
    %508 = vmatprep.subr.mxu0 0.0
    %509 = vmatpush1.msra.mxu0 0.0
    %510 = vmatprep.subr.mxu0 0.0
    %511 = vmatpush1.msra.mxu0 0.0
    %512 = vmatprep.subr.mxu0 0.0
    %513 = vmatpush1.msra.mxu0 0.0
    %514 = vmatprep.subr.mxu0 0.0
    %515 = vmatpush1.msra.mxu0 0.0
    %516 = vmatprep.subr.mxu0 0.0
    %517 = vmatpush1.msra.mxu0 0.0
    %518 = vmatprep.subr.mxu0 0.0
    %519 = vmatpush1.msra.mxu0 0.0
    %520 = vmatprep.subr.mxu0 0.0
    %521 = vmatpush1.msra.mxu0 0.0
    %522 = vmatprep.subr.mxu0 0.0
    %523 = vmatpush1.msra.mxu0 0.0
    %524 = vmatprep.subr.mxu0 0.0
    %525 = vmatpush1.msra.mxu0 0.0
    %526 = vmatprep.subr.mxu0 0.0
    %527 = vmatpush1.msra.mxu0 0.0
    %528 = vmatprep.subr.mxu0 0.0
    %529 = vmatpush1.msra.mxu0 %v54
    %530 = vmatprep.subr.mxu0 0.0
    %531 = vmatpush2.msra.mxu0 0.0
    %532 = vmatprep.subr.mxu0 0.0
    %533 = vmatpush2.msra.mxu0 0.0
    %534 = vmatprep.subr.mxu0 0.0
    %535 = vmatpush2.msra.mxu0 0.0
    %536 = vmatprep.subr.mxu0 0.0
    %537 = vmatpush2.msra.mxu0 0.0
    %538 = vmatprep.subr.mxu0 0.0
    %539 = vmatpush2.msra.mxu0 0.0
    %540 = vmatprep.subr.mxu0 0.0
    %541 = vmatpush2.msra.mxu0 0.0
    %542 = vmatprep.subr.mxu0 0.0
    %543 = vmatpush2.msra.mxu0 0.0
    %544 = vmatprep.subr.mxu0 0.0
    %545 = vmatpush2.msra.mxu0 0.0
    %546 = vmatprep.subr.mxu0 0.0
    %547 = vmatpush2.msra.mxu0 0.0
    %548 = vmatprep.subr.mxu0 0.0
    %549 = vmatpush2.msra.mxu0 0.0
    %550 = vmatprep.subr.mxu0 0.0
    %551 = vmatpush2.msra.mxu0 0.0
    %552 = vmatprep.subr.mxu0 0.0
    %553 = vmatpush2.msra.mxu0 0.0
    %554 = vmatprep.subr.mxu0 0.0
    %555 = vmatpush2.msra.mxu0 0.0
    %556 = vmatprep.subr.mxu0 0.0
    %557 = vmatpush2.msra.mxu0 0.0
    %558 = vmatprep.subr.mxu0 0.0
    %559 = vmatpush2.msra.mxu0 0.0
    %560 = vmatprep.subr.mxu0 0.0
    %561 = vmatpush2.msra.mxu0 0.0
    %562 = vmatprep.mubr.f32.mxu0 0.0
    %563 = vmatmul.mubr.f32.gmra.mxu0 %v496
    %v564 = vpop.f32.mrf.mxu0
    %v565 = vadd.f32 0.0, %v564
    %v566 = vpop.f32.mrf.mxu0
    %567 = vdwg.mxu0
    %v569 = vsel %vm56, %v47, 0
    %571 = vmatprep.subr.mxu0 0.0
    %572 = vmatpush1.msra.mxu0 0.0
    %573 = vmatprep.subr.mxu0 0.0
    %574 = vmatpush1.msra.mxu0 0.0
    %575 = vmatprep.subr.mxu0 0.0
    %576 = vmatpush1.msra.mxu0 0.0
    %577 = vmatprep.subr.mxu0 0.0
    %578 = vmatpush1.msra.mxu0 0.0
    %579 = vmatprep.subr.mxu0 0.0
    %580 = vmatpush1.msra.mxu0 0.0
    %581 = vmatprep.subr.mxu0 0.0
    %582 = vmatpush1.msra.mxu0 0.0
    %583 = vmatprep.subr.mxu0 0.0
    %584 = vmatpush1.msra.mxu0 0.0
    %585 = vmatprep.subr.mxu0 0.0
    %586 = vmatpush1.msra.mxu0 0.0
    %587 = vmatprep.subr.mxu0 0.0
    %588 = vmatpush1.msra.mxu0 0.0
    %589 = vmatprep.subr.mxu0 0.0
    %590 = vmatpush1.msra.mxu0 0.0
    %591 = vmatprep.subr.mxu0 0.0
    %592 = vmatpush1.msra.mxu0 0.0
    %593 = vmatprep.subr.mxu0 0.0
    %594 = vmatpush1.msra.mxu0 0.0
    %595 = vmatprep.subr.mxu0 0.0
    %596 = vmatpush1.msra.mxu0 0.0
    %597 = vmatprep.subr.mxu0 0.0
    %598 = vmatpush1.msra.mxu0 0.0
    %599 = vmatprep.subr.mxu0 0.0
    %600 = vmatpush1.msra.mxu0 0.0
    %601 = vmatprep.subr.mxu0 0.0
    %602 = vmatpush1.msra.mxu0 %v55
    %603 = vmatprep.subr.mxu0 0.0
    %604 = vmatpush2.msra.mxu0 0.0
    %605 = vmatprep.subr.mxu0 0.0
    %606 = vmatpush2.msra.mxu0 0.0
    %607 = vmatprep.subr.mxu0 0.0
    %608 = vmatpush2.msra.mxu0 0.0
    %609 = vmatprep.subr.mxu0 0.0
    %610 = vmatpush2.msra.mxu0 0.0
    %611 = vmatprep.subr.mxu0 0.0
    %612 = vmatpush2.msra.mxu0 0.0
    %613 = vmatprep.subr.mxu0 0.0
    %614 = vmatpush2.msra.mxu0 0.0
    %615 = vmatprep.subr.mxu0 0.0
    %616 = vmatpush2.msra.mxu0 0.0
    %617 = vmatprep.subr.mxu0 0.0
    %618 = vmatpush2.msra.mxu0 0.0
    %619 = vmatprep.subr.mxu0 0.0
    %620 = vmatpush2.msra.mxu0 0.0
    %621 = vmatprep.subr.mxu0 0.0
    %622 = vmatpush2.msra.mxu0 0.0
    %623 = vmatprep.subr.mxu0 0.0
    %624 = vmatpush2.msra.mxu0 0.0
    %625 = vmatprep.subr.mxu0 0.0
    %626 = vmatpush2.msra.mxu0 0.0
    %627 = vmatprep.subr.mxu0 0.0
    %628 = vmatpush2.msra.mxu0 0.0
    %629 = vmatprep.subr.mxu0 0.0
    %630 = vmatpush2.msra.mxu0 0.0
    %631 = vmatprep.subr.mxu0 0.0
    %632 = vmatpush2.msra.mxu0 0.0
    %633 = vmatprep.subr.mxu0 0.0
    %634 = vmatpush2.msra.mxu0 0.0
    %635 = vmatprep.mubr.f32.mxu0 0.0
    %636 = vmatmul.mubr.f32.gmra.mxu0 %v569
    %v637 = vpop.f32.mrf.mxu0
    %v638 = vadd.f32 0.0, %v637
    %v639 = vpop.f32.mrf.mxu0
    %640 = vdwg.mxu0
    %vm641 = vcmask 261120
    %642 = vst.msk [vmem:[#allocation7] sm:$0xff] %vm641, %v127
    %643 = vst.msk [vmem:[#allocation7 + $0x8] sm:$0xff] %vm641, %v200
    %644 = vst.msk [vmem:[#allocation7 + $0x10] sm:$0xff] %vm641, %v273
    %645 = vst.msk [vmem:[#allocation7 + $0x18] sm:$0xff] %vm641, %v346
    %646 = vst.msk [vmem:[#allocation7 + $0x20] sm:$0xff] %vm641, %v419
    %647 = vst.msk [vmem:[#allocation7 + $0x28] sm:$0xff] %vm641, %v492
    %648 = vst.msk [vmem:[#allocation7 + $0x30] sm:$0xff] %vm641, %v565
    %649 = vst.msk [vmem:[#allocation7 + $0x38] sm:$0xff] %vm641, %v638
    // Predicated region
    $region18: #{tpu_custom_call.1} parent=1 // pred_check
      _
    $region19: #{tpu_custom_call.1} parent=1 // pred_check_branch
      %651 = sbr.rel (0) target = $region21
    $region20: #{tpu_custom_call.1} parent=1 // pred_region
      %s653 = ssub.s32 1024, 1024
      %654 = vsyncadd [#allocation4], %s653
      %s655 = sshll.u32 [#allocation7], 4
      %s656 = int_to_ptr.vmem [resolvable:$true] %s655
      %661 = dma.vmem_to_hbm [thread:$0]  %s656, 1024, %s2, [#allocation4], 128, 128, 8
    $region21: #{tpu_custom_call.1} parent=1 // pred_fallthru
      _
    // Predicated region
    $region22: #{tpu_custom_call.1} parent=1 // pred_check
      _
    $region23: #{tpu_custom_call.1} parent=1 // pred_check_branch
      %663 = sbr.rel (0) target = $region25
    $region24: #{tpu_custom_call.1} parent=1 // pred_region
      %664 = dma.done [#allocation4], 1024
    $region25: #{tpu_custom_call.1} parent=1 // pred_fallthru
      _
    %665 = vsyncpa [#allocation3], 1
    %666 = vsyncpa [#allocation6], 1
    %667 = vsyncpa [#allocation4], 1

</llo_original>
